<compile_context>
chip_gen: v5e
topology: v5e:2x2
jax: 0.10.0
libtpu: 0.0.40
codegen_flags: <defaults>
</compile_context>

<pallas_src>
import math

import jax
import jax.numpy as jnp
from jax.experimental import pallas as pl
from jax.experimental.pallas import tpu as pltpu

LANE = 128            # TPU lane width: pad all feature dims to a multiple of this
DEFAULT_TILE_B = 256  # batch tile; fits comfortably in scoped VMEM on v5e/v6e/v7x


def _round_up(x, m):
    return ((x + m - 1) // m) * m


def make_mlp_kernel(n_layers):
    """Fused MLP forward kernel for `n_layers` Linear layers.

    Kernel args: (x_ref, w0_ref, b0_ref, ..., w{n-1}_ref, b{n-1}_ref, out_ref)
    ReLU after every layer except the last (matches nn.Sequential in the module).
    Weights are (in_pad, out_pad) bf16; biases are (1, out_pad) f32.
    """

    def kernel(*refs):
        x_ref = refs[0]
        o_ref = refs[-1]
        param_refs = refs[1:-1]
        h = x_ref[...]                                  # (TILE_B, in_pad) f32
        for i in range(n_layers):
            w = param_refs[2 * i][...]                  # (in_pad, out_pad) bf16
            b = param_refs[2 * i + 1][...]              # (1, out_pad)   f32
            # bf16 operands on the MXU, f32 accumulation; bias/ReLU in f32.
            h = jnp.dot(h.astype(jnp.bfloat16), w,
                        preferred_element_type=jnp.float32) + b
            if i < n_layers - 1:
                h = jnp.maximum(h, 0.0)                 # ReLU on the VPU
        o_ref[...] = h.astype(o_ref.dtype)

    return kernel


def init_params(key, input_size, hidden_sizes, output_size):
    """Deterministic init mimicking torch.nn.Linear default U(-1/sqrt(fan_in), +)."""
    sizes = [input_size] + list(hidden_sizes) + [output_size]
    params = []
    for i in range(len(sizes) - 1):
        fan_in, fan_out = sizes[i], sizes[i + 1]
        key, kw, kb = jax.random.split(key, 3)
        bound = 1.0 / math.sqrt(fan_in)
        # stored already transposed: (in, out) so forward is h @ W + b
        w = jax.random.uniform(kw, (fan_in, fan_out), jnp.float32, -bound, bound)
        b = jax.random.uniform(kb, (1, fan_out), jnp.float32, -bound, bound)
        params.append((w, b))
    return params


def _pad_params(params):
    """Zero-pad feature dims to LANE multiples; pre-cast weights to bf16.

    Zero padding preserves semantics exactly: padded weight cols/rows and
    padded biases are zero, so padded hidden units are ReLU(0)=0 and
    contribute nothing downstream.
    """
    padded = []
    for w, b in params:
        fan_in, fan_out = w.shape
        in_p, out_p = _round_up(fan_in, LANE), _round_up(fan_out, LANE)
        wp = jnp.zeros((in_p, out_p), jnp.bfloat16)
        wp = wp.at[:fan_in, :fan_out].set(w.astype(jnp.bfloat16))
        bp = jnp.zeros((1, out_p), jnp.float32).at[:, :fan_out].set(b)
        padded.append((wp, bp))
    return padded


def regularized_regression_forward(x, params, tile_b=DEFAULT_TILE_B):
    """Runs the fused MLP forward as a single batch-tiled Pallas call."""
    n_layers = len(params)
    in_size = params[0][0].shape[0]
    out_size = params[-1][0].shape[1]
    batch = x.shape[0]

    padded = _pad_params(params)
    in_pad = padded[0][0].shape[0]
    out_pad = padded[-1][0].shape[1]

    # Pad batch to a multiple of tile_b (tail rows are zeros, sliced off below)
    # and pad input features to the lane width.
    batch_pad = _round_up(max(batch, 1), tile_b)
    xp = jnp.zeros((batch_pad, in_pad), jnp.float32)
    xp = xp.at[:batch, :in_size].set(x.astype(jnp.float32))

    flat = []
    for w, b in padded:
        flat.extend([w, b])

    grid = (batch_pad // tile_b,)

    in_specs = [pl.BlockSpec((tile_b, in_pad), lambda i: (i, 0))]
    for w, b in padded:
        # constant index_map -> weights/biases stay resident in VMEM across steps
        in_specs.append(pl.BlockSpec(w.shape, lambda i: (0, 0)))
        in_specs.append(pl.BlockSpec(b.shape, lambda i: (0, 0)))
    out_specs = pl.BlockSpec((tile_b, out_pad), lambda i: (i, 0))

    flops = 2 * batch_pad * sum(w.shape[0] * w.shape[1] for w, _ in padded)
    bytes_accessed = (
        xp.size * 4
        + sum(w.size * 2 + b.size * 4 for w, b in padded)
        + batch_pad * out_pad * 4
    )

    kernel = make_mlp_kernel(n_layers)
    out_padded = pl.pallas_call(
        kernel,
        out_shape=jax.ShapeDtypeStruct((batch_pad, out_pad), jnp.float32),
        grid=grid,
        in_specs=in_specs,
        out_specs=out_specs,
        compiler_params=pltpu.CompilerParams(
            dimension_semantics=("parallel",),      # megacore sharding on v7x
            vmem_limit_bytes=32 * 1024 * 1024,      # explicit, safe on all gens
        ),
        cost_estimate=pl.CostEstimate(
            flops=flops, transcendentals=0, bytes_accessed=bytes_accessed),
    )(xp, *flat)

    return out_padded[:batch, :out_size]


def reference_forward(x, params, compute_dtype=jnp.float32):
    """Pure-JAX reference matching PyTorch semantics (optionally bf16 operands)."""
    h = x.astype(jnp.float32)
    for i, (w, b) in enumerate(params):
        h = jnp.dot(h.astype(compute_dtype), w.astype(compute_dtype),
                    preferred_element_type=jnp.float32) + b
        if i < len(params) - 1:
            h = jnp.maximum(h, 0.0)
    return h


if __name__ == "__main__":
    # Small shapes consistent with the module: input_size=32, hidden=[64, 32], output=1
    batch = 8
    input_size = 32
    hidden_sizes = (64, 32)
    output_size = 1

    key = jax.random.PRNGKey(0)
    key, kx = jax.random.split(key)
    x = jax.random.normal(kx, (batch, input_size), jnp.float32)
    params = init_params(key, input_size, hidden_sizes, output_size)

    out = regularized_regression_forward(x, params, tile_b=128)
    out = jax.block_until_ready(out)

    ref_bf16 = reference_forward(x, params, compute_dtype=jnp.bfloat16)
    ref_f32 = reference_forward(x, params, compute_dtype=jnp.float32)

    assert out.shape == (batch, output_size)
    assert jnp.allclose(out, ref_bf16, atol=2e-3, rtol=2e-3), "mismatch vs bf16 reference"
    assert jnp.allclose(out, ref_f32, atol=5e-2, rtol=5e-2), "mismatch vs f32 reference"

    # TODO(synk): regularization_loss() is a training-time scalar over parameters,
    # not part of forward(); intentionally not implemented as a kernel.
    print("KERNEL_OK")
</pallas_src>

<mosaic_0001>
module attributes {stable_mosaic.version = 11 : i64} {
  func.func @kernel(%arg0: i32, %arg1: memref<128x128xf32, #tpu.memory_space<vmem>>, %arg2: memref<128x128xbf16, #tpu.memory_space<vmem>>, %arg3: memref<1x128xf32, #tpu.memory_space<vmem>>, %arg4: memref<128x128xbf16, #tpu.memory_space<vmem>>, %arg5: memref<1x128xf32, #tpu.memory_space<vmem>>, %arg6: memref<128x128xbf16, #tpu.memory_space<vmem>>, %arg7: memref<1x128xf32, #tpu.memory_space<vmem>>, %arg8: memref<128x128xf32, #tpu.memory_space<vmem>>) attributes {dimension_semantics = [#tpu.dimension_semantics<parallel>], iteration_bounds = array<i64: 1>, scalar_prefetch = 0 : i64, scratch_operands = 0 : i64, tpu.core_type = #tpu.core_type<tc>, window_params = [{transform_indices = @transform_0, window_bounds = array<i64: 128, 128>}, {pipeline_mode = #tpu.pipeline_mode<synchronous>, transform_indices = @transform_1, window_bounds = array<i64: 128, 128>}, {pipeline_mode = #tpu.pipeline_mode<synchronous>, transform_indices = @transform_2, window_bounds = array<i64: 1, 128>}, {pipeline_mode = #tpu.pipeline_mode<synchronous>, transform_indices = @transform_3, window_bounds = array<i64: 128, 128>}, {pipeline_mode = #tpu.pipeline_mode<synchronous>, transform_indices = @transform_4, window_bounds = array<i64: 1, 128>}, {pipeline_mode = #tpu.pipeline_mode<synchronous>, transform_indices = @transform_5, window_bounds = array<i64: 128, 128>}, {pipeline_mode = #tpu.pipeline_mode<synchronous>, transform_indices = @transform_6, window_bounds = array<i64: 1, 128>}, {transform_indices = @transform_7, window_bounds = array<i64: 128, 128>}]} {
    %c0 = arith.constant 0 : index
    %c0_0 = arith.constant 0 : index
    %0 = vector.load %arg1[%c0, %c0_0] : memref<128x128xf32, #tpu.memory_space<vmem>>, vector<128x128xf32>
    %c0_1 = arith.constant 0 : index
    %c0_2 = arith.constant 0 : index
    %1 = vector.load %arg2[%c0_1, %c0_2] : memref<128x128xbf16, #tpu.memory_space<vmem>>, vector<128x128xbf16>
    %c0_3 = arith.constant 0 : index
    %c0_4 = arith.constant 0 : index
    %2 = vector.load %arg3[%c0_3, %c0_4] : memref<1x128xf32, #tpu.memory_space<vmem>>, vector<1x128xf32>
    %3 = arith.truncf %0 : vector<128x128xf32> to vector<128x128xbf16>
    %cst = arith.constant dense<0.000000e+00> : vector<128x128xf32>
    %4 = tpu.matmul %3, %1, %cst {dimension_numbers = #tpu.dot_dimension_numbers<[1], [0], [0], [1], [0, 0, 1, 1], [], []>} : vector<128x128xbf16>, vector<128x128xbf16>, vector<128x128xf32> -> vector<128x128xf32>
    %5 = vector.broadcast %2 : vector<1x128xf32> to vector<128x128xf32>
    %6 = arith.addf %4, %5 : vector<128x128xf32>
    %cst_5 = arith.constant 0.000000e+00 : f32
    %7 = vector.broadcast %cst_5 : f32 to vector<128x128xf32>
    %8 = arith.maximumf %6, %7 : vector<128x128xf32>
    %c0_6 = arith.constant 0 : index
    %c0_7 = arith.constant 0 : index
    %9 = vector.load %arg4[%c0_6, %c0_7] : memref<128x128xbf16, #tpu.memory_space<vmem>>, vector<128x128xbf16>
    %c0_8 = arith.constant 0 : index
    %c0_9 = arith.constant 0 : index
    %10 = vector.load %arg5[%c0_8, %c0_9] : memref<1x128xf32, #tpu.memory_space<vmem>>, vector<1x128xf32>
    %11 = arith.truncf %8 : vector<128x128xf32> to vector<128x128xbf16>
    %cst_10 = arith.constant dense<0.000000e+00> : vector<128x128xf32>
    %12 = tpu.matmul %11, %9, %cst_10 {dimension_numbers = #tpu.dot_dimension_numbers<[1], [0], [0], [1], [0, 0, 1, 1], [], []>} : vector<128x128xbf16>, vector<128x128xbf16>, vector<128x128xf32> -> vector<128x128xf32>
    %13 = vector.broadcast %10 : vector<1x128xf32> to vector<128x128xf32>
    %14 = arith.addf %12, %13 : vector<128x128xf32>
    %cst_11 = arith.constant 0.000000e+00 : f32
    %15 = vector.broadcast %cst_11 : f32 to vector<128x128xf32>
    %16 = arith.maximumf %14, %15 : vector<128x128xf32>
    %c0_12 = arith.constant 0 : index
    %c0_13 = arith.constant 0 : index
    %17 = vector.load %arg6[%c0_12, %c0_13] : memref<128x128xbf16, #tpu.memory_space<vmem>>, vector<128x128xbf16>
    %c0_14 = arith.constant 0 : index
    %c0_15 = arith.constant 0 : index
    %18 = vector.load %arg7[%c0_14, %c0_15] : memref<1x128xf32, #tpu.memory_space<vmem>>, vector<1x128xf32>
    %19 = arith.truncf %16 : vector<128x128xf32> to vector<128x128xbf16>
    %cst_16 = arith.constant dense<0.000000e+00> : vector<128x128xf32>
    %20 = tpu.matmul %19, %17, %cst_16 {dimension_numbers = #tpu.dot_dimension_numbers<[1], [0], [0], [1], [0, 0, 1, 1], [], []>} : vector<128x128xbf16>, vector<128x128xbf16>, vector<128x128xf32> -> vector<128x128xf32>
    %21 = vector.broadcast %18 : vector<1x128xf32> to vector<128x128xf32>
    %22 = arith.addf %20, %21 : vector<128x128xf32>
    %c0_17 = arith.constant 0 : index
    %c0_18 = arith.constant 0 : index
    %23 = vector.load %arg8[%c0_17, %c0_18] : memref<128x128xf32, #tpu.memory_space<vmem>>, vector<128x128xf32>
    tpu.vector_store %arg8[%c0_17, %c0_18], %22 {strides = array<i32>} : memref<128x128xf32, #tpu.memory_space<vmem>>, vector<128x128xf32>,
    return
  }
  func.func @transform_0(%arg0: i32) -> (i32, i32) {
    %c0_i32 = arith.constant 0 : i32
    %c0_i32_0 = arith.constant 0 : i32
    return %arg0, %c0_i32 : i32, i32
  }
  func.func @transform_1(%arg0: i32) -> (i32, i32) {
    %c0_i32 = arith.constant 0 : i32
    %c0_i32_0 = arith.constant 0 : i32
    %c0_i32_1 = arith.constant 0 : i32
    return %c0_i32, %c0_i32_0 : i32, i32
  }
  func.func @transform_2(%arg0: i32) -> (i32, i32) {
    %c0_i32 = arith.constant 0 : i32
    %c0_i32_0 = arith.constant 0 : i32
    %c0_i32_1 = arith.constant 0 : i32
    return %c0_i32, %c0_i32_0 : i32, i32
  }
  func.func @transform_3(%arg0: i32) -> (i32, i32) {
    %c0_i32 = arith.constant 0 : i32
    %c0_i32_0 = arith.constant 0 : i32
    %c0_i32_1 = arith.constant 0 : i32
    return %c0_i32, %c0_i32_0 : i32, i32
  }
  func.func @transform_4(%arg0: i32) -> (i32, i32) {
    %c0_i32 = arith.constant 0 : i32
    %c0_i32_0 = arith.constant 0 : i32
    %c0_i32_1 = arith.constant 0 : i32
    return %c0_i32, %c0_i32_0 : i32, i32
  }
  func.func @transform_5(%arg0: i32) -> (i32, i32) {
    %c0_i32 = arith.constant 0 : i32
    %c0_i32_0 = arith.constant 0 : i32
    %c0_i32_1 = arith.constant 0 : i32
    return %c0_i32, %c0_i32_0 : i32, i32
  }
  func.func @transform_6(%arg0: i32) -> (i32, i32) {
    %c0_i32 = arith.constant 0 : i32
    %c0_i32_0 = arith.constant 0 : i32
    %c0_i32_1 = arith.constant 0 : i32
    return %c0_i32, %c0_i32_0 : i32, i32
  }
  func.func @transform_7(%arg0: i32) -> (i32, i32) {
    %c0_i32 = arith.constant 0 : i32
    %c0_i32_0 = arith.constant 0 : i32
    return %arg0, %c0_i32 : i32, i32
  }
}

</mosaic_0001>

<llo_original>
// kernel: tpu_custom_call.1
$region0: #{tpu_custom_call.1}
  #allocation0 [shape = 'u32[]', space=smem, size = 0x4, offset = 0x4, fixed_abs, tag = 'smem constant byte address 0x4 - core index']
  #allocation1 [shape = 'u32[72,128]{1,0:T(1,128)}', space=vmem, size = 0x9000, scoped, tag = 'internal scratch']
  %s0 = inlined_call_operand.hbm [shape: f32[128,128], index: 0, kind: input, shape index: {}]
  %s1 = inlined_call_operand.hbm [shape: bf16[128,128], index: 1, kind: input, shape index: {}]
  %s2 = inlined_call_operand.vmem [shape: f32[1,128], index: 2, kind: input, shape index: {}]
  %s3 = inlined_call_operand.hbm [shape: bf16[128,128], index: 3, kind: input, shape index: {}]
  %s4 = inlined_call_operand.vmem [shape: f32[1,128], index: 4, kind: input, shape index: {}]
  %s5 = inlined_call_operand.hbm [shape: bf16[128,128], index: 5, kind: input, shape index: {}]
  %s6 = inlined_call_operand.vmem [shape: f32[1,128], index: 6, kind: input, shape index: {}]
  %s7 = inlined_call_operand.hbm [shape: f32[128,128], index: 7, kind: output, shape index: {}]
  %s8 = sld [smem:[#allocation0]]
  $region54: #{tpu_custom_call.1} parent=0
    _
  %s10 = ssub.s32 1, %s8
  %s11 = scalar_select 0, %s10, %s8
  $region1: #{tpu_custom_call.1} parent=0
    #allocation2 [shape = 'u8[65536]{0}', space=vmem, size = 0x10000, scoped, tag = 'input window, operand 0, single buffered']
    #allocation3 [shape = 's32[1]{0}', space=sflag, size = 0x4, scoped, tag = 'scoped memory for tpu_custom_call.1']
    #allocation4 [shape = 's32[1]{0}', space=sflag, size = 0x4, scoped, tag = 'scoped memory for tpu_custom_call.1']
    #allocation5 [shape = 'u8[32768]{0}', space=vmem, size = 0x8000, scoped, tag = 'input window, operand 1, single buffered']
    #allocation6 [shape = 's32[1]{0}', space=sflag, size = 0x4, scoped, tag = 'scoped memory for tpu_custom_call.1']
    #allocation7 [shape = 'u8[32768]{0}', space=vmem, size = 0x8000, scoped, tag = 'input window, operand 3, single buffered']
    #allocation8 [shape = 'u8[32768]{0}', space=vmem, size = 0x8000, scoped, tag = 'input window, operand 5, single buffered']
    #allocation9 [shape = 's32[1]{0}', space=sflag, size = 0x4, scoped, tag = 'scoped memory for tpu_custom_call.1']
    #allocation10 [shape = 'u8[65536]{0}', space=vmem, size = 0x10000, scoped, tag = 'output window, operand 0, single buffered']
    %12 = vsyncpa [#allocation3], 0
    %13 = vsyncpa [#allocation6], 0
    %14 = vsyncpa [#allocation9], 0
    %15 = vsyncpa [#allocation4], 0
    // Predicated region
    $region2: #{tpu_custom_call.1} parent=1 // pred_check
      _
    $region3: #{tpu_custom_call.1} parent=1 // pred_check_branch
      %17 = sbr.rel (0) target = $region5
    $region4: #{tpu_custom_call.1} parent=1 // pred_region
      %19 = vsyncadd [#allocation3], 0
      %s20 = sshll.u32 %s0, 4
      %s21 = int_to_ptr.hbm [resolvable:$true] %s20
      %s22 = sshll.u32 [#allocation2], 4
      %s23 = int_to_ptr.vmem [resolvable:$true] %s22
      %28 = dma.hbm_to_vmem [thread:$0]  %s21, 2048, %s23, [#allocation3], 128, 128, 8
    $region5: #{tpu_custom_call.1} parent=1 // pred_fallthru
      _
    // Predicated region
    $region6: #{tpu_custom_call.1} parent=1 // pred_check
      _
    $region7: #{tpu_custom_call.1} parent=1 // pred_check_branch
      %30 = sbr.rel (0) target = $region9
    $region8: #{tpu_custom_call.1} parent=1 // pred_region
      %32 = vsyncadd [#allocation6], 0
      %s33 = sshll.u32 %s1, 4
      %s34 = int_to_ptr.hbm [resolvable:$true] %s33
      %s35 = sshll.u32 [#allocation5], 4
      %s36 = int_to_ptr.vmem [resolvable:$true] %s35
      %41 = dma.hbm_to_vmem [thread:$0]  %s34, 1024, %s36, [#allocation6], 64, 64, 4
    $region9: #{tpu_custom_call.1} parent=1 // pred_fallthru
      _
    // Predicated region
    $region10: #{tpu_custom_call.1} parent=1 // pred_check
      _
    $region11: #{tpu_custom_call.1} parent=1 // pred_check_branch
      %43 = sbr.rel (0) target = $region13
    $region12: #{tpu_custom_call.1} parent=1 // pred_region
      _
    $region13: #{tpu_custom_call.1} parent=1 // pred_fallthru
      _
    // Predicated region
    $region14: #{tpu_custom_call.1} parent=1 // pred_check
      _
    $region15: #{tpu_custom_call.1} parent=1 // pred_check_branch
      %45 = sbr.rel (0) target = $region17
    $region16: #{tpu_custom_call.1} parent=1 // pred_region
      %47 = vsyncadd [#allocation6], 0
      %s48 = sshll.u32 %s3, 4
      %s49 = int_to_ptr.hbm [resolvable:$true] %s48
      %s50 = sshll.u32 [#allocation7], 4
      %s51 = int_to_ptr.vmem [resolvable:$true] %s50
      %56 = dma.hbm_to_vmem [thread:$0]  %s49, 1024, %s51, [#allocation6], 64, 64, 4
    $region17: #{tpu_custom_call.1} parent=1 // pred_fallthru
      _
    // Predicated region
    $region18: #{tpu_custom_call.1} parent=1 // pred_check
      _
    $region19: #{tpu_custom_call.1} parent=1 // pred_check_branch
      %58 = sbr.rel (0) target = $region21
    $region20: #{tpu_custom_call.1} parent=1 // pred_region
      _
    $region21: #{tpu_custom_call.1} parent=1 // pred_fallthru
      _
    // Predicated region
    $region22: #{tpu_custom_call.1} parent=1 // pred_check
      _
    $region23: #{tpu_custom_call.1} parent=1 // pred_check_branch
      %60 = sbr.rel (0) target = $region25
    $region24: #{tpu_custom_call.1} parent=1 // pred_region
      %62 = vsyncadd [#allocation9], 0
      %s63 = sshll.u32 %s5, 4
      %s64 = int_to_ptr.hbm [resolvable:$true] %s63
      %s65 = sshll.u32 [#allocation8], 4
      %s66 = int_to_ptr.vmem [resolvable:$true] %s65
      %71 = dma.hbm_to_vmem [thread:$0]  %s64, 1024, %s66, [#allocation9], 64, 64, 4
    $region25: #{tpu_custom_call.1} parent=1 // pred_fallthru
      _
    // Predicated region
    $region26: #{tpu_custom_call.1} parent=1 // pred_check
      _
    $region27: #{tpu_custom_call.1} parent=1 // pred_check_branch
      %73 = sbr.rel (0) target = $region29
    $region28: #{tpu_custom_call.1} parent=1 // pred_region
      _
    $region29: #{tpu_custom_call.1} parent=1 // pred_fallthru
      _
    // Predicated region
    $region30: #{tpu_custom_call.1} parent=1 // pred_check
      _
    $region31: #{tpu_custom_call.1} parent=1 // pred_check_branch
      %75 = sbr.rel (0) target = $region33
    $region32: #{tpu_custom_call.1} parent=1 // pred_region
      %77 = dma.done [#allocation3], 2048
    $region33: #{tpu_custom_call.1} parent=1 // pred_fallthru
      _
    // Predicated region
    $region34: #{tpu_custom_call.1} parent=1 // pred_check
      _
    $region35: #{tpu_custom_call.1} parent=1 // pred_check_branch
      %79 = sbr.rel (0) target = $region37
    $region36: #{tpu_custom_call.1} parent=1 // pred_region
      %81 = dma.done [#allocation6], 1024
    $region37: #{tpu_custom_call.1} parent=1 // pred_fallthru
      _
    // Predicated region
    $region38: #{tpu_custom_call.1} parent=1 // pred_check
      _
    $region39: #{tpu_custom_call.1} parent=1 // pred_check_branch
      %83 = sbr.rel (0) target = $region41
    $region40: #{tpu_custom_call.1} parent=1 // pred_region
      %85 = dma.done [#allocation6], 1024
    $region41: #{tpu_custom_call.1} parent=1 // pred_fallthru
      _
    // Predicated region
    $region42: #{tpu_custom_call.1} parent=1 // pred_check
      _
    $region43: #{tpu_custom_call.1} parent=1 // pred_check_branch
      %87 = sbr.rel (0) target = $region45
    $region44: #{tpu_custom_call.1} parent=1 // pred_region
      %89 = dma.done [#allocation9], 1024
    $region45: #{tpu_custom_call.1} parent=1 // pred_fallthru
      _
    %v90 = vld [vmem:[#allocation2] sm:$0xff]
    %v91 = vld [vmem:[#allocation2 + $0x8] sm:$0xff]
    %v92 = vld [vmem:[#allocation2 + $0x10] sm:$0xff]
    %v93 = vld [vmem:[#allocation2 + $0x18] sm:$0xff]
    %v94 = vld [vmem:[#allocation2 + $0x20] sm:$0xff]
    %v95 = vld [vmem:[#allocation2 + $0x28] sm:$0xff]
    %v96 = vld [vmem:[#allocation2 + $0x30] sm:$0xff]
    %v97 = vld [vmem:[#allocation2 + $0x38] sm:$0xff]
    %v98 = vld [vmem:[#allocation2 + $0x40] sm:$0xff]
    %v99 = vld [vmem:[#allocation2 + $0x48] sm:$0xff]
    %v100 = vld [vmem:[#allocation2 + $0x50] sm:$0xff]
    %v101 = vld [vmem:[#allocation2 + $0x58] sm:$0xff]
    %v102 = vld [vmem:[#allocation2 + $0x60] sm:$0xff]
    %v103 = vld [vmem:[#allocation2 + $0x68] sm:$0xff]
    %v104 = vld [vmem:[#allocation2 + $0x70] sm:$0xff]
    %v105 = vld [vmem:[#allocation2 + $0x78] sm:$0xff]
    %v106 = vld [vmem:[#allocation5] sm:$0xf]
    %v107 = vld [vmem:[#allocation5 + $0x4] sm:$0xf]
    %v108 = vld [vmem:[#allocation5 + $0x8] sm:$0xf]
    %v109 = vld [vmem:[#allocation5 + $0xc] sm:$0xf]
    %v110 = vld [vmem:[#allocation5 + $0x10] sm:$0xf]
    %v111 = vld [vmem:[#allocation5 + $0x14] sm:$0xf]
    %v112 = vld [vmem:[#allocation5 + $0x18] sm:$0xf]
    %v113 = vld [vmem:[#allocation5 + $0x1c] sm:$0xf]
    %v114 = vld [vmem:[#allocation5 + $0x20] sm:$0xf]
    %v115 = vld [vmem:[#allocation5 + $0x24] sm:$0xf]
    %v116 = vld [vmem:[#allocation5 + $0x28] sm:$0xf]
    %v117 = vld [vmem:[#allocation5 + $0x2c] sm:$0xf]
    %v118 = vld [vmem:[#allocation5 + $0x30] sm:$0xf]
    %v119 = vld [vmem:[#allocation5 + $0x34] sm:$0xf]
    %v120 = vld [vmem:[#allocation5 + $0x38] sm:$0xf]
    %v121 = vld [vmem:[#allocation5 + $0x3c] sm:$0xf]
    %v122 = vld [vmem:[%s2] sm:$0x1]
    %v123 = vpack.c.bf16 %v91, %v90
    %v124 = vpack.c.bf16 %v93, %v92
    %v125 = vpack.c.bf16 %v95, %v94
    %v126 = vpack.c.bf16 %v97, %v96
    %v127 = vpack.c.bf16 %v99, %v98
    %v128 = vpack.c.bf16 %v101, %v100
    %v129 = vpack.c.bf16 %v103, %v102
    %v130 = vpack.c.bf16 %v105, %v104
    %v132 = vperm.slane %v122, 0
    %v150 = vunpack.c.l.b16 %v106
    %v151 = vunpack.c.l.b16 %v107
    %v152 = vunpack.c.l.b16 %v108
    %v153 = vunpack.c.l.b16 %v109
    %v154 = vunpack.c.l.b16 %v110
    %v155 = vunpack.c.l.b16 %v111
    %v156 = vunpack.c.l.b16 %v112
    %v157 = vunpack.c.l.b16 %v113
    %v158 = vunpack.c.l.b16 %v114
    %v159 = vunpack.c.l.b16 %v115
    %v160 = vunpack.c.l.b16 %v116
    %v161 = vunpack.c.l.b16 %v117
    %v162 = vunpack.c.l.b16 %v118
    %v163 = vunpack.c.l.b16 %v119
    %v164 = vunpack.c.l.b16 %v120
    %v165 = vunpack.c.l.b16 %v121
    %v166 = vpack.c.b16 %v151, %v150
    %v167 = vpack.c.b16 %v153, %v152
    %v168 = vpack.c.b16 %v155, %v154
    %v169 = vpack.c.b16 %v157, %v156
    %v170 = vpack.c.b16 %v159, %v158
    %v171 = vpack.c.b16 %v161, %v160
    %v172 = vpack.c.b16 %v163, %v162
    %v173 = vpack.c.b16 %v165, %v164
    %182 = vmatpush.bf16.msra.mxu0 %v173
    %183 = vmatpush.bf16.msra.mxu0 %v172
    %184 = vmatpush.bf16.msra.mxu0 %v171
    %185 = vmatpush.bf16.msra.mxu0 %v170
    %186 = vmatpush.bf16.msra.mxu0 %v169
    %187 = vmatpush.bf16.msra.mxu0 %v168
    %188 = vmatpush.bf16.msra.mxu0 %v167
    %189 = vmatpush.bf16.msra.mxu0 %v166
    %190 = vmatmul.bf16.gmra.mxu0 %v123
    %v191 = vpop.f32.mrf.mxu0
    %v192 = vadd.f32 %v132, %v191
    %v193 = vpop.f32.mrf.mxu0
    %v194 = vadd.f32 %v132, %v193
    %195 = vmatmul.bf16.gmra.mxu0 %v124
    %v196 = vpop.f32.mrf.mxu0
    %v197 = vadd.f32 %v132, %v196
    %v198 = vpop.f32.mrf.mxu0
    %v199 = vadd.f32 %v132, %v198
    %200 = vmatmul.bf16.gmra.mxu0 %v125
    %v201 = vpop.f32.mrf.mxu0
    %v202 = vadd.f32 %v132, %v201
    %v203 = vpop.f32.mrf.mxu0
    %v204 = vadd.f32 %v132, %v203
    %205 = vmatmul.bf16.gmra.mxu0 %v126
    %v206 = vpop.f32.mrf.mxu0
    %v207 = vadd.f32 %v132, %v206
    %v208 = vpop.f32.mrf.mxu0
    %v209 = vadd.f32 %v132, %v208
    %210 = vmatmul.bf16.gmra.mxu0 %v127
    %v211 = vpop.f32.mrf.mxu0
    %v212 = vadd.f32 %v132, %v211
    %v213 = vpop.f32.mrf.mxu0
    %v214 = vadd.f32 %v132, %v213
    %215 = vmatmul.bf16.gmra.mxu0 %v128
    %v216 = vpop.f32.mrf.mxu0
    %v217 = vadd.f32 %v132, %v216
    %v218 = vpop.f32.mrf.mxu0
    %v219 = vadd.f32 %v132, %v218
    %220 = vmatmul.bf16.gmra.mxu0 %v129
    %v221 = vpop.f32.mrf.mxu0
    %v222 = vadd.f32 %v132, %v221
    %v223 = vpop.f32.mrf.mxu0
    %v224 = vadd.f32 %v132, %v223
    %225 = vmatmul.bf16.gmra.mxu0 %v130
    %v226 = vpop.f32.mrf.mxu0
    %v227 = vadd.f32 %v132, %v226
    %v228 = vpop.f32.mrf.mxu0
    %v229 = vadd.f32 %v132, %v228
    %230 = vdwg.mxu0
    %v231 = vmax.f32 %v192, 0.0
    %v232 = vmax.f32 %v194, 0.0
    %v233 = vmax.f32 %v197, 0.0
    %v234 = vmax.f32 %v199, 0.0
    %v235 = vmax.f32 %v202, 0.0
    %v236 = vmax.f32 %v204, 0.0
    %v237 = vmax.f32 %v207, 0.0
    %v238 = vmax.f32 %v209, 0.0
    %v239 = vmax.f32 %v212, 0.0
    %v240 = vmax.f32 %v214, 0.0
    %v241 = vmax.f32 %v217, 0.0
    %v242 = vmax.f32 %v219, 0.0
    %v243 = vmax.f32 %v222, 0.0
    %v244 = vmax.f32 %v224, 0.0
    %v245 = vmax.f32 %v227, 0.0
    %v246 = vmax.f32 %v229, 0.0
    %v247 = vld [vmem:[#allocation7] sm:$0xf]
    %v248 = vld [vmem:[#allocation7 + $0x4] sm:$0xf]
    %v249 = vld [vmem:[#allocation7 + $0x8] sm:$0xf]
    %v250 = vld [vmem:[#allocation7 + $0xc] sm:$0xf]
    %v251 = vld [vmem:[#allocation7 + $0x10] sm:$0xf]
    %v252 = vld [vmem:[#allocation7 + $0x14] sm:$0xf]
    %v253 = vld [vmem:[#allocation7 + $0x18] sm:$0xf]
    %v254 = vld [vmem:[#allocation7 + $0x1c] sm:$0xf]
    %v255 = vld [vmem:[#allocation7 + $0x20] sm:$0xf]
    %v256 = vld [vmem:[#allocation7 + $0x24] sm:$0xf]
    %v257 = vld [vmem:[#allocation7 + $0x28] sm:$0xf]
    %v258 = vld [vmem:[#allocation7 + $0x2c] sm:$0xf]
    %v259 = vld [vmem:[#allocation7 + $0x30] sm:$0xf]
    %v260 = vld [vmem:[#allocation7 + $0x34] sm:$0xf]
    %v261 = vld [vmem:[#allocation7 + $0x38] sm:$0xf]
    %v262 = vld [vmem:[#allocation7 + $0x3c] sm:$0xf]
    %v263 = vld [vmem:[%s4] sm:$0x1]
    %v264 = vpack.c.bf16 %v232, %v231
    %v265 = vpack.c.bf16 %v234, %v233
    %v266 = vpack.c.bf16 %v236, %v235
    %v267 = vpack.c.bf16 %v238, %v237
    %v268 = vpack.c.bf16 %v240, %v239
    %v269 = vpack.c.bf16 %v242, %v241
    %v270 = vpack.c.bf16 %v244, %v243
    %v271 = vpack.c.bf16 %v246, %v245
    %v273 = vperm.slane %v263, 0
    %v291 = vunpack.c.l.b16 %v247
    %v292 = vunpack.c.l.b16 %v248
    %v293 = vunpack.c.l.b16 %v249
    %v294 = vunpack.c.l.b16 %v250
    %v295 = vunpack.c.l.b16 %v251
    %v296 = vunpack.c.l.b16 %v252
    %v297 = vunpack.c.l.b16 %v253
    %v298 = vunpack.c.l.b16 %v254
    %v299 = vunpack.c.l.b16 %v255
    %v300 = vunpack.c.l.b16 %v256
    %v301 = vunpack.c.l.b16 %v257
    %v302 = vunpack.c.l.b16 %v258
    %v303 = vunpack.c.l.b16 %v259
    %v304 = vunpack.c.l.b16 %v260
    %v305 = vunpack.c.l.b16 %v261
    %v306 = vunpack.c.l.b16 %v262
    %v307 = vpack.c.b16 %v292, %v291
    %v308 = vpack.c.b16 %v294, %v293
    %v309 = vpack.c.b16 %v296, %v295
    %v310 = vpack.c.b16 %v298, %v297
    %v311 = vpack.c.b16 %v300, %v299
    %v312 = vpack.c.b16 %v302, %v301
    %v313 = vpack.c.b16 %v304, %v303
    %v314 = vpack.c.b16 %v306, %v305
    %323 = vmatpush.bf16.msra.mxu0 %v314
    %324 = vmatpush.bf16.msra.mxu0 %v313
    %325 = vmatpush.bf16.msra.mxu0 %v312
    %326 = vmatpush.bf16.msra.mxu0 %v311
    %327 = vmatpush.bf16.msra.mxu0 %v310
    %328 = vmatpush.bf16.msra.mxu0 %v309
    %329 = vmatpush.bf16.msra.mxu0 %v308
    %330 = vmatpush.bf16.msra.mxu0 %v307
    %331 = vmatmul.bf16.gmra.mxu0 %v264
    %v332 = vpop.f32.mrf.mxu0
    %v333 = vadd.f32 %v273, %v332
    %v334 = vpop.f32.mrf.mxu0
    %v335 = vadd.f32 %v273, %v334
    %336 = vmatmul.bf16.gmra.mxu0 %v265
    %v337 = vpop.f32.mrf.mxu0
    %v338 = vadd.f32 %v273, %v337
    %v339 = vpop.f32.mrf.mxu0
    %v340 = vadd.f32 %v273, %v339
    %341 = vmatmul.bf16.gmra.mxu0 %v266
    %v342 = vpop.f32.mrf.mxu0
    %v343 = vadd.f32 %v273, %v342
    %v344 = vpop.f32.mrf.mxu0
    %v345 = vadd.f32 %v273, %v344
    %346 = vmatmul.bf16.gmra.mxu0 %v267
    %v347 = vpop.f32.mrf.mxu0
    %v348 = vadd.f32 %v273, %v347
    %v349 = vpop.f32.mrf.mxu0
    %v350 = vadd.f32 %v273, %v349
    %351 = vmatmul.bf16.gmra.mxu0 %v268
    %v352 = vpop.f32.mrf.mxu0
    %v353 = vadd.f32 %v273, %v352
    %v354 = vpop.f32.mrf.mxu0
    %v355 = vadd.f32 %v273, %v354
    %356 = vmatmul.bf16.gmra.mxu0 %v269
    %v357 = vpop.f32.mrf.mxu0
    %v358 = vadd.f32 %v273, %v357
    %v359 = vpop.f32.mrf.mxu0
    %v360 = vadd.f32 %v273, %v359
    %361 = vmatmul.bf16.gmra.mxu0 %v270
    %v362 = vpop.f32.mrf.mxu0
    %v363 = vadd.f32 %v273, %v362
    %v364 = vpop.f32.mrf.mxu0
    %v365 = vadd.f32 %v273, %v364
    %366 = vmatmul.bf16.gmra.mxu0 %v271
    %v367 = vpop.f32.mrf.mxu0
    %v368 = vadd.f32 %v273, %v367
    %v369 = vpop.f32.mrf.mxu0
    %v370 = vadd.f32 %v273, %v369
    %371 = vdwg.mxu0
    %v372 = vmax.f32 %v333, 0.0
    %v373 = vmax.f32 %v335, 0.0
    %v374 = vmax.f32 %v338, 0.0
    %v375 = vmax.f32 %v340, 0.0
    %v376 = vmax.f32 %v343, 0.0
    %v377 = vmax.f32 %v345, 0.0
    %v378 = vmax.f32 %v348, 0.0
    %v379 = vmax.f32 %v350, 0.0
    %v380 = vmax.f32 %v353, 0.0
    %v381 = vmax.f32 %v355, 0.0
    %v382 = vmax.f32 %v358, 0.0
    %v383 = vmax.f32 %v360, 0.0
    %v384 = vmax.f32 %v363, 0.0
    %v385 = vmax.f32 %v365, 0.0
    %v386 = vmax.f32 %v368, 0.0
    %v387 = vmax.f32 %v370, 0.0
    %v388 = vld [vmem:[#allocation8] sm:$0xf]
    %v389 = vld [vmem:[#allocation8 + $0x4] sm:$0xf]
    %v390 = vld [vmem:[#allocation8 + $0x8] sm:$0xf]
    %v391 = vld [vmem:[#allocation8 + $0xc] sm:$0xf]
    %v392 = vld [vmem:[#allocation8 + $0x10] sm:$0xf]
    %v393 = vld [vmem:[#allocation8 + $0x14] sm:$0xf]
    %v394 = vld [vmem:[#allocation8 + $0x18] sm:$0xf]
    %v395 = vld [vmem:[#allocation8 + $0x1c] sm:$0xf]
    %v396 = vld [vmem:[#allocation8 + $0x20] sm:$0xf]
    %v397 = vld [vmem:[#allocation8 + $0x24] sm:$0xf]
    %v398 = vld [vmem:[#allocation8 + $0x28] sm:$0xf]
    %v399 = vld [vmem:[#allocation8 + $0x2c] sm:$0xf]
    %v400 = vld [vmem:[#allocation8 + $0x30] sm:$0xf]
    %v401 = vld [vmem:[#allocation8 + $0x34] sm:$0xf]
    %v402 = vld [vmem:[#allocation8 + $0x38] sm:$0xf]
    %v403 = vld [vmem:[#allocation8 + $0x3c] sm:$0xf]
    %v404 = vld [vmem:[%s6] sm:$0x1]
    %v405 = vpack.c.bf16 %v373, %v372
    %v406 = vpack.c.bf16 %v375, %v374
    %v407 = vpack.c.bf16 %v377, %v376
    %v408 = vpack.c.bf16 %v379, %v378
    %v409 = vpack.c.bf16 %v381, %v380
    %v410 = vpack.c.bf16 %v383, %v382
    %v411 = vpack.c.bf16 %v385, %v384
    %v412 = vpack.c.bf16 %v387, %v386
    %v414 = vperm.slane %v404, 0
    %v432 = vunpack.c.l.b16 %v388
    %v433 = vunpack.c.l.b16 %v389
    %v434 = vunpack.c.l.b16 %v390
    %v435 = vunpack.c.l.b16 %v391
    %v436 = vunpack.c.l.b16 %v392
    %v437 = vunpack.c.l.b16 %v393
    %v438 = vunpack.c.l.b16 %v394
    %v439 = vunpack.c.l.b16 %v395
    %v440 = vunpack.c.l.b16 %v396
    %v441 = vunpack.c.l.b16 %v397
    %v442 = vunpack.c.l.b16 %v398
    %v443 = vunpack.c.l.b16 %v399
    %v444 = vunpack.c.l.b16 %v400
    %v445 = vunpack.c.l.b16 %v401
    %v446 = vunpack.c.l.b16 %v402
    %v447 = vunpack.c.l.b16 %v403
    %v448 = vpack.c.b16 %v433, %v432
    %v449 = vpack.c.b16 %v435, %v434
    %v450 = vpack.c.b16 %v437, %v436
    %v451 = vpack.c.b16 %v439, %v438
    %v452 = vpack.c.b16 %v441, %v440
    %v453 = vpack.c.b16 %v443, %v442
    %v454 = vpack.c.b16 %v445, %v444
    %v455 = vpack.c.b16 %v447, %v446
    %464 = vmatpush.bf16.msra.mxu0 %v455
    %465 = vmatpush.bf16.msra.mxu0 %v454
    %466 = vmatpush.bf16.msra.mxu0 %v453
    %467 = vmatpush.bf16.msra.mxu0 %v452
    %468 = vmatpush.bf16.msra.mxu0 %v451
    %469 = vmatpush.bf16.msra.mxu0 %v450
    %470 = vmatpush.bf16.msra.mxu0 %v449
    %471 = vmatpush.bf16.msra.mxu0 %v448
    %472 = vmatmul.bf16.gmra.mxu0 %v405
    %v473 = vpop.f32.mrf.mxu0
    %v474 = vadd.f32 %v414, %v473
    %v475 = vpop.f32.mrf.mxu0
    %v476 = vadd.f32 %v414, %v475
    %477 = vmatmul.bf16.gmra.mxu0 %v406
    %v478 = vpop.f32.mrf.mxu0
    %v479 = vadd.f32 %v414, %v478
    %v480 = vpop.f32.mrf.mxu0
    %v481 = vadd.f32 %v414, %v480
    %482 = vmatmul.bf16.gmra.mxu0 %v407
    %v483 = vpop.f32.mrf.mxu0
    %v484 = vadd.f32 %v414, %v483
    %v485 = vpop.f32.mrf.mxu0
    %v486 = vadd.f32 %v414, %v485
    %487 = vmatmul.bf16.gmra.mxu0 %v408
    %v488 = vpop.f32.mrf.mxu0
    %v489 = vadd.f32 %v414, %v488
    %v490 = vpop.f32.mrf.mxu0
    %v491 = vadd.f32 %v414, %v490
    %492 = vmatmul.bf16.gmra.mxu0 %v409
    %v493 = vpop.f32.mrf.mxu0
    %v494 = vadd.f32 %v414, %v493
    %v495 = vpop.f32.mrf.mxu0
    %v496 = vadd.f32 %v414, %v495
    %497 = vmatmul.bf16.gmra.mxu0 %v410
    %v498 = vpop.f32.mrf.mxu0
    %v499 = vadd.f32 %v414, %v498
    %v500 = vpop.f32.mrf.mxu0
    %v501 = vadd.f32 %v414, %v500
    %502 = vmatmul.bf16.gmra.mxu0 %v411
    %v503 = vpop.f32.mrf.mxu0
    %v504 = vadd.f32 %v414, %v503
    %v505 = vpop.f32.mrf.mxu0
    %v506 = vadd.f32 %v414, %v505
    %507 = vmatmul.bf16.gmra.mxu0 %v412
    %v508 = vpop.f32.mrf.mxu0
    %v509 = vadd.f32 %v414, %v508
    %v510 = vpop.f32.mrf.mxu0
    %v511 = vadd.f32 %v414, %v510
    %512 = vdwg.mxu0
    %513 = vst [vmem:[#allocation10] sm:$0xff] %v474
    %514 = vst [vmem:[#allocation10 + $0x8] sm:$0xff] %v476
    %515 = vst [vmem:[#allocation10 + $0x10] sm:$0xff] %v479
    %516 = vst [vmem:[#allocation10 + $0x18] sm:$0xff] %v481
    %517 = vst [vmem:[#allocation10 + $0x20] sm:$0xff] %v484
    %518 = vst [vmem:[#allocation10 + $0x28] sm:$0xff] %v486
    %519 = vst [vmem:[#allocation10 + $0x30] sm:$0xff] %v489
    %520 = vst [vmem:[#allocation10 + $0x38] sm:$0xff] %v491
    %521 = vst [vmem:[#allocation10 + $0x40] sm:$0xff] %v494
    %522 = vst [vmem:[#allocation10 + $0x48] sm:$0xff] %v496
    %523 = vst [vmem:[#allocation10 + $0x50] sm:$0xff] %v499
    %524 = vst [vmem:[#allocation10 + $0x58] sm:$0xff] %v501
    %525 = vst [vmem:[#allocation10 + $0x60] sm:$0xff] %v504
    %526 = vst [vmem:[#allocation10 + $0x68] sm:$0xff] %v506
    %527 = vst [vmem:[#allocation10 + $0x70] sm:$0xff] %v509
    %528 = vst [vmem:[#allocation10 + $0x78] sm:$0xff] %v511
    // Predicated region
    $region46: #{tpu_custom_call.1} parent=1 // pred_check
      _
    $region47: #{tpu_custom_call.1} parent=1 // pred_check_branch
      %530 = sbr.rel (0) target = $region49
    $region48: #{tpu_custom_call.1} parent=1 // pred_region
      %532 = vsyncadd [#allocation4], 0
      %s533 = sshll.u32 [#allocation10], 4
      %s534 = int_to_ptr.vmem [resolvable:$true] %s533
      %s535 = sshll.u32 %s7, 4
      %s536 = int_to_ptr.hbm [resolvable:$true] %s535
      %541 = dma.vmem_to_hbm [thread:$0]  %s534, 2048, %s536, [#allocation4], 128, 128, 8
    $region49: #{tpu_custom_call.1} parent=1 // pred_fallthru
      _
    // Predicated region
    $region50: #{tpu_custom_call.1} parent=1 // pred_check
      _
    $region51: #{tpu_custom_call.1} parent=1 // pred_check_branch
      %543 = sbr.rel (0) target = $region53
    $region52: #{tpu_custom_call.1} parent=1 // pred_region
      %545 = dma.done [#allocation4], 2048
    $region53: #{tpu_custom_call.1} parent=1 // pred_fallthru
      _
    %546 = vsyncpa [#allocation3], 1
    %547 = vsyncpa [#allocation6], 1
    %548 = vsyncpa [#allocation9], 1
    %549 = vsyncpa [#allocation4], 1

</llo_original>
